<compile_context>
chip_gen: v7x
topology: tpu7x:2x2x1
jax: 0.10.0
libtpu: 0.0.40
codegen_flags: <defaults>
</compile_context>

<pallas_src>
import numpy as np
import jax
import jax.numpy as jnp
from jax.experimental import pallas as pl
from jax.experimental.pallas import tpu as pltpu

# ---- loss hyper-parameters (mmdet defaults) ---------------------------------
FOCAL_GAMMA = 2.0          # (gamma==2 is hard-coded as pt*pt below)
FOCAL_ALPHA = 0.25
CLS_LOSS_WEIGHT = 2.0
BOX_LOSS_WEIGHT = 5.0
IOU_LOSS_WEIGHT = 2.0
GIOU_EPS = 1e-6
CLS_PAD_LOGIT = -1e9       # padded logit columns -> exactly zero focal loss


def _round_up(x, m):
    return ((x + m - 1) // m) * m


# ---- Pallas kernel ----------------------------------------------------------
def _track_loss_kernel(cls_ref, toh_ref, pbox_ref, tbox_ref, bw_ref, out_ref):
    L = out_ref.shape[0]

    # ---- sigmoid focal loss: lane-dense (L, NC_pad) logits ------------------
    x = cls_ref[...]                              # (L, NC_pad) f32 logits
    t = toh_ref[...]                              # (1, NC_pad) one-hot (bg/pad=0)
    e = jnp.exp(-jnp.abs(x))                      # single EUP exp per element
    r = pl.reciprocal(1.0 + e, approx=True)
    p = jnp.where(x >= 0.0, r, e * r)             # numerically-stable sigmoid
    pt = (1.0 - p) * t + p * (1.0 - t)
    focal_w = (FOCAL_ALPHA * t + (1.0 - FOCAL_ALPHA) * (1.0 - t)) * (pt * pt)
    bce = jnp.maximum(x, 0.0) - x * t + jnp.log1p(e)
    cls_sum = jnp.sum(bce * focal_w, axis=-1, keepdims=True)          # (L, 1)

    # ---- box losses: coords on leading axis, tracks lane-dense --------------
    pcx, pcy, pww, phh = pbox_ref[0], pbox_ref[1], pbox_ref[2], pbox_ref[3]  # (L, N_pad)
    tcx, tcy, tww, thh = tbox_ref[0], tbox_ref[1], tbox_ref[2], tbox_ref[3]  # (1, N_pad)
    w_row = bw_ref[...]                                                      # (1, N_pad)

    # L1 (weighted sum); all 4 coordinate weights are identical by construction
    l1_map = (jnp.abs(pcx - tcx) + jnp.abs(pcy - tcy) +
              jnp.abs(pww - tww) + jnp.abs(phh - thh)) * w_row
    box_sum = jnp.sum(l1_map, axis=-1, keepdims=True)                 # (L, 1)

    # GIoU (cxcywh -> xyxy in-kernel), weighted sum
    px1 = pcx - 0.5 * pww; px2 = pcx + 0.5 * pww
    py1 = pcy - 0.5 * phh; py2 = pcy + 0.5 * phh
    tx1 = tcx - 0.5 * tww; tx2 = tcx + 0.5 * tww
    ty1 = tcy - 0.5 * thh; ty2 = tcy + 0.5 * thh

    area_p = (px2 - px1) * (py2 - py1)
    area_t = (tx2 - tx1) * (ty2 - ty1)
    ix1 = jnp.maximum(px1, tx1); iy1 = jnp.maximum(py1, ty1)
    ix2 = jnp.minimum(px2, tx2); iy2 = jnp.minimum(py2, ty2)
    overlap = jnp.maximum(ix2 - ix1, 0.0) * jnp.maximum(iy2 - iy1, 0.0)
    union = jnp.maximum(area_p + area_t - overlap, GIOU_EPS)
    ex1 = jnp.minimum(px1, tx1); ey1 = jnp.minimum(py1, ty1)
    ex2 = jnp.maximum(px2, tx2); ey2 = jnp.maximum(py2, ty2)
    enclose = jnp.maximum((ex2 - ex1) * (ey2 - ey1), GIOU_EPS)
    ious = overlap * pl.reciprocal(union, approx=True)
    gious = ious - (enclose - union) * pl.reciprocal(enclose, approx=True)
    iou_sum = jnp.sum((1.0 - gious) * w_row, axis=-1, keepdims=True)  # (L, 1)

    # ---- single lane-dense output write --------------------------------------
    lane = jax.lax.broadcasted_iota(jnp.int32, (L, 128), 1)
    out_ref[...] = (jnp.where(lane == 0, cls_sum, 0.0) +
                    jnp.where(lane == 1, box_sum, 0.0) +
                    jnp.where(lane == 2, iou_sum, 0.0))


@jax.jit
def _track_loss_sums(track_class, track_coord, tgt_onehot, tgt_box, box_w):
    """Raw (un-normalized) loss sums.

    track_class : [L, B, N, C]  logits
    track_coord : [L, B, N, 4]  cxcywh
    tgt_onehot  : [B, N, C]     one-hot class targets (background = all-zero)
    tgt_box     : [B, N, 4]     cxcywh targets (zeros where unmatched)
    box_w       : [B, N]        0/1 positive-track weights
    returns (cls_sums, box_sums, iou_sums), each [B, L] float32.
    """
    L, B, N, C = track_class.shape
    NC = N * C
    NC_pad = _round_up(NC, 128)
    N_pad = _round_up(N, 128)

    # lane-dense class slab: [B, L, NC_pad]; pad with large-negative logits
    cls = jnp.transpose(jnp.asarray(track_class, jnp.float32), (1, 0, 2, 3))
    cls = cls.reshape(B, L, NC)
    if NC_pad > NC:
        cls = jnp.pad(cls, ((0, 0), (0, 0), (0, NC_pad - NC)),
                      constant_values=CLS_PAD_LOGIT)

    toh = jnp.asarray(tgt_onehot, jnp.float32).reshape(B, 1, NC)
    if NC_pad > NC:
        toh = jnp.pad(toh, ((0, 0), (0, 0), (0, NC_pad - NC)))

    # boxes: coords on leading axis, tracks on lanes
    pbox = jnp.transpose(jnp.asarray(track_coord, jnp.float32), (1, 3, 0, 2))  # [B,4,L,N]
    tbox = jnp.transpose(jnp.asarray(tgt_box, jnp.float32), (0, 2, 1))[:, :, None, :]  # [B,4,1,N]
    bw = jnp.asarray(box_w, jnp.float32)[:, None, :]                           # [B,1,N]
    if N_pad > N:
        pbox = jnp.pad(pbox, ((0, 0), (0, 0), (0, 0), (0, N_pad - N)))
        tbox = jnp.pad(tbox, ((0, 0), (0, 0), (0, 0), (0, N_pad - N)))
        bw = jnp.pad(bw, ((0, 0), (0, 0), (0, N_pad - N)))

    out = pl.pallas_call(
        _track_loss_kernel,
        grid=(B,),
        in_specs=[
            pl.BlockSpec((None, L, NC_pad), lambda b: (b, 0, 0)),
            pl.BlockSpec((None, 1, NC_pad), lambda b: (b, 0, 0)),
            pl.BlockSpec((None, 4, L, N_pad), lambda b: (b, 0, 0, 0)),
            pl.BlockSpec((None, 4, 1, N_pad), lambda b: (b, 0, 0, 0)),
            pl.BlockSpec((None, 1, N_pad), lambda b: (b, 0, 0)),
        ],
        out_specs=pl.BlockSpec((None, L, 128), lambda b: (b, 0, 0)),
        out_shape=jax.ShapeDtypeStruct((B, L, 128), jnp.float32),
        compiler_params=pltpu.CompilerParams(
            dimension_semantics=("parallel",)),
    )(cls, toh, pbox, tbox, bw)
    return out[:, :, 0], out[:, :, 1], out[:, :, 2]


# ---- Module wrapper (host glue mirrors the PyTorch forward) ------------------
class TransMotionDetectorTrackCriterion:
    def __init__(self):
        self.debug = False
        self.debug_states = []

    def __call__(self, track_class, track_coord, track_instance_ids, targets):
        if track_class.shape[2] == 0:
            self.debug_states.append({})
            return {}

        L, B, N, C = track_class.shape
        BOX_DIM = track_coord.shape[-1]
        BS = len(targets)

        # ---- target assignment (vectorized numpy, same semantics as ref) ----
        # TODO(synk): dict-based instance-id matching has no Pallas equivalent;
        # it stays on host (vectorized per batch element).
        track_ids = np.asarray(track_instance_ids)
        tgt_onehot = np.zeros((BS, N, C), np.float32)
        tgt_box = np.zeros((BS, N, BOX_DIM), np.float32)
        box_w = np.zeros((BS, N), np.float32)
        num_pos = np.zeros(BS, np.int64)
        num_gts = np.zeros(BS, np.int64)
        for b, target in enumerate(targets):
            gids = np.asarray(target['instance_ids']).reshape(-1)
            glabels = np.asarray(target['labels']).reshape(-1)
            gboxes = np.asarray(target['boxes']).reshape(-1, BOX_DIM)
            num_gts[b] = gids.shape[0]
            if gids.shape[0] == 0:
                continue
            match = track_ids[b][:, None] == gids[None, :]       # (N, G)
            pos = match.any(axis=1)
            gidx = match.argmax(axis=1)
            pos_n = np.nonzero(pos)[0]
            tgt_onehot[b, pos_n, glabels[gidx[pos_n]]] = 1.0     # bg -> all-zero row
            tgt_box[b, pos_n] = gboxes[gidx[pos_n]]
            box_w[b, pos_n] = 1.0
            num_pos[b] = pos_n.shape[0]

        # ---- hot path: Pallas kernel (all layers of a batch per grid step) ---
        cls_sums, box_sums, iou_sums = jax.device_get(_track_loss_sums(
            jnp.asarray(track_class, jnp.float32),
            jnp.asarray(track_coord, jnp.float32),
            tgt_onehot, tgt_box, box_w))

        # ---- scalar normalization & loss dict (glue) -------------------------
        total_gts = int(num_gts.sum())
        norm = max(total_gts, 1) / BS
        losses = {}
        for b in range(BS):
            cls_avg_factor = max(int(num_pos[b]), 1)
            ng = float(num_gts[b])
            for layer in range(L):
                prefix = f'd{layer}.track_loss'
                losses[f'{prefix}_cls_b{b}'] = (
                    CLS_LOSS_WEIGHT * cls_sums[b, layer] / cls_avg_factor * ng / norm)
                if num_pos[b] > 0:
                    npos = float(num_pos[b])
                    losses[f'{prefix}_iou_b{b}'] = (
                        IOU_LOSS_WEIGHT * iou_sums[b, layer] / npos * ng / norm)
                    losses[f'{prefix}_box_b{b}'] = (
                        BOX_LOSS_WEIGHT * box_sums[b, layer] / npos * ng / norm)
        if self.debug:
            self.debug_states.append(dict(pred_cls=track_class,
                                          pred_box=track_coord))
        return losses


# ---- demo -------------------------------------------------------------------
if __name__ == "__main__":
    key = jax.random.PRNGKey(0)
    k1, k2, k3, k4 = jax.random.split(key, 4)

    L, B, N, C, BOX_DIM = 3, 2, 8, 16, 4

    track_class = jax.random.normal(k1, (L, B, N, C), jnp.float32)
    # cxcywh boxes with positive extents
    track_coord = jax.random.uniform(k2, (L, B, N, BOX_DIM), jnp.float32,
                                     minval=0.05, maxval=0.5)

    track_instance_ids = np.array(
        [[1, 2, 3, 100, 4, 101, 102, 103],
         [5, 200, 6, 201, 202, 203, 204, 205]], np.int32)

    targets = [
        {
            'instance_ids': np.array([1, 2, 3, 4], np.int32),
            'labels': np.array([0, 3, 7, 15], np.int32),
            'boxes': np.asarray(jax.random.uniform(
                k3, (4, BOX_DIM), jnp.float32, minval=0.05, maxval=0.5)),
        },
        {
            'instance_ids': np.array([5, 6], np.int32),
            'labels': np.array([2, 9], np.int32),
            'boxes': np.asarray(jax.random.uniform(
                k4, (2, BOX_DIM), jnp.float32, minval=0.05, maxval=0.5)),
        },
    ]

    criterion = TransMotionDetectorTrackCriterion()
    losses = criterion(track_class, track_coord, track_instance_ids, targets)

    stacked = jnp.stack([jnp.asarray(v, jnp.float32) for v in losses.values()])
    jax.block_until_ready(stacked)
    assert losses, "empty loss dict"
    assert bool(jnp.all(jnp.isfinite(stacked))), "non-finite loss values"
    print("KERNEL_OK")
</pallas_src>

<mosaic_0001>
module attributes {stable_mosaic.version = 11 : i64} {
  func.func @_track_loss_kernel(%arg0: i32, %arg1: memref<1x3x128xf32, #tpu.memory_space<vmem>>, %arg2: memref<1x1x128xf32, #tpu.memory_space<vmem>>, %arg3: memref<1x4x3x128xf32, #tpu.memory_space<vmem>>, %arg4: memref<1x4x1x128xf32, #tpu.memory_space<vmem>>, %arg5: memref<1x1x128xf32, #tpu.memory_space<vmem>>, %arg6: memref<1x3x128xf32, #tpu.memory_space<vmem>>) attributes {dimension_semantics = [#tpu.dimension_semantics<parallel>], iteration_bounds = array<i64: 2>, scalar_prefetch = 0 : i64, scratch_operands = 0 : i64, tpu.core_type = #tpu.core_type<tc>, window_params = [{transform_indices = @transform_0, window_bounds = array<i64: 1, 3, 128>}, {transform_indices = @transform_1, window_bounds = array<i64: 1, 1, 128>}, {transform_indices = @transform_2, window_bounds = array<i64: 1, 4, 3, 128>}, {transform_indices = @transform_3, window_bounds = array<i64: 1, 4, 1, 128>}, {transform_indices = @transform_4, window_bounds = array<i64: 1, 1, 128>}, {transform_indices = @transform_5, window_bounds = array<i64: 1, 3, 128>}]} {
    %c0 = arith.constant 0 : index
    %c0_0 = arith.constant 0 : index
    %c0_1 = arith.constant 0 : index
    %0 = vector.load %arg1[%c0, %c0_0, %c0_1] : memref<1x3x128xf32, #tpu.memory_space<vmem>>, vector<1x3x128xf32>
    %1 = vector.shape_cast %0 : vector<1x3x128xf32> to vector<3x128xf32>
    %c0_2 = arith.constant 0 : index
    %c0_3 = arith.constant 0 : index
    %c0_4 = arith.constant 0 : index
    %2 = vector.load %arg2[%c0_2, %c0_3, %c0_4] : memref<1x1x128xf32, #tpu.memory_space<vmem>>, vector<1x1x128xf32>
    %3 = vector.shape_cast %2 : vector<1x1x128xf32> to vector<1x128xf32>
    %4 = math.absf %1 : vector<3x128xf32>
    %cst = arith.constant 0.000000e+00 : f32
    %5 = vector.broadcast %cst : f32 to vector<3x128xf32>
    %6 = arith.subf %5, %4 : vector<3x128xf32>
    %7 = math.exp %6 : vector<3x128xf32>
    %cst_5 = arith.constant 1.000000e+00 : f32
    %8 = vector.broadcast %cst_5 : f32 to vector<3x128xf32>
    %9 = arith.addf %8, %7 : vector<3x128xf32>
    %10 = tpu.reciprocal %9 {approx = true} : vector<3x128xf32> -> vector<3x128xf32>
    %cst_6 = arith.constant 0.000000e+00 : f32
    %11 = vector.broadcast %cst_6 : f32 to vector<3x128xf32>
    %12 = arith.cmpf oge, %1, %11 : vector<3x128xf32>
    %13 = arith.mulf %7, %10 : vector<3x128xf32>
    %14 = arith.select %12, %10, %13 : vector<3x128xi1>, vector<3x128xf32>
    %cst_7 = arith.constant 1.000000e+00 : f32
    %15 = vector.broadcast %cst_7 : f32 to vector<3x128xf32>
    %16 = arith.subf %15, %14 : vector<3x128xf32>
    %17 = vector.broadcast %3 : vector<1x128xf32> to vector<3x128xf32>
    %18 = arith.mulf %16, %17 : vector<3x128xf32>
    %cst_8 = arith.constant 1.000000e+00 : f32
    %19 = vector.broadcast %cst_8 : f32 to vector<1x128xf32>
    %20 = arith.subf %19, %3 : vector<1x128xf32>
    %21 = vector.broadcast %20 : vector<1x128xf32> to vector<3x128xf32>
    %22 = arith.mulf %14, %21 : vector<3x128xf32>
    %23 = arith.addf %18, %22 : vector<3x128xf32>
    %cst_9 = arith.constant 2.500000e-01 : f32
    %24 = vector.broadcast %cst_9 : f32 to vector<1x128xf32>
    %25 = arith.mulf %24, %3 : vector<1x128xf32>
    %cst_10 = arith.constant 1.000000e+00 : f32
    %26 = vector.broadcast %cst_10 : f32 to vector<1x128xf32>
    %27 = arith.subf %26, %3 : vector<1x128xf32>
    %cst_11 = arith.constant 7.500000e-01 : f32
    %28 = vector.broadcast %cst_11 : f32 to vector<1x128xf32>
    %29 = arith.mulf %28, %27 : vector<1x128xf32>
    %30 = arith.addf %25, %29 : vector<1x128xf32>
    %31 = arith.mulf %23, %23 : vector<3x128xf32>
    %32 = vector.broadcast %30 : vector<1x128xf32> to vector<3x128xf32>
    %33 = arith.mulf %32, %31 : vector<3x128xf32>
    %cst_12 = arith.constant 0.000000e+00 : f32
    %34 = vector.broadcast %cst_12 : f32 to vector<3x128xf32>
    %35 = arith.maximumf %1, %34 : vector<3x128xf32>
    %36 = vector.broadcast %3 : vector<1x128xf32> to vector<3x128xf32>
    %37 = arith.mulf %1, %36 : vector<3x128xf32>
    %38 = arith.subf %35, %37 : vector<3x128xf32>
    %39 = math.log1p %7 : vector<3x128xf32>
    %40 = arith.addf %38, %39 : vector<3x128xf32>
    %41 = arith.mulf %40, %33 : vector<3x128xf32>
    %cst_13 = arith.constant dense<0.000000e+00> : vector<3xf32>
    %42 = vector.multi_reduction <add>, %41, %cst_13 [1] : vector<3x128xf32> to vector<3xf32>
    %43 = vector.shape_cast %42 : vector<3xf32> to vector<3x1xf32>
    %c0_14 = arith.constant 0 : index
    %c0_15 = arith.constant 0 : index
    %c0_16 = arith.constant 0 : index
    %c0_17 = arith.constant 0 : index
    %44 = vector.load %arg3[%c0_14, %c0_15, %c0_16, %c0_17] : memref<1x4x3x128xf32, #tpu.memory_space<vmem>>, vector<1x1x3x128xf32>
    %45 = vector.shape_cast %44 : vector<1x1x3x128xf32> to vector<3x128xf32>
    %c0_18 = arith.constant 0 : index
    %c1 = arith.constant 1 : index
    %c0_19 = arith.constant 0 : index
    %c0_20 = arith.constant 0 : index
    %46 = vector.load %arg3[%c0_18, %c1, %c0_19, %c0_20] : memref<1x4x3x128xf32, #tpu.memory_space<vmem>>, vector<1x1x3x128xf32>
    %47 = vector.shape_cast %46 : vector<1x1x3x128xf32> to vector<3x128xf32>
    %c0_21 = arith.constant 0 : index
    %c2 = arith.constant 2 : index
    %c0_22 = arith.constant 0 : index
    %c0_23 = arith.constant 0 : index
    %48 = vector.load %arg3[%c0_21, %c2, %c0_22, %c0_23] : memref<1x4x3x128xf32, #tpu.memory_space<vmem>>, vector<1x1x3x128xf32>
    %49 = vector.shape_cast %48 : vector<1x1x3x128xf32> to vector<3x128xf32>
    %c0_24 = arith.constant 0 : index
    %c3 = arith.constant 3 : index
    %c0_25 = arith.constant 0 : index
    %c0_26 = arith.constant 0 : index
    %50 = vector.load %arg3[%c0_24, %c3, %c0_25, %c0_26] : memref<1x4x3x128xf32, #tpu.memory_space<vmem>>, vector<1x1x3x128xf32>
    %51 = vector.shape_cast %50 : vector<1x1x3x128xf32> to vector<3x128xf32>
    %c0_27 = arith.constant 0 : index
    %c0_28 = arith.constant 0 : index
    %c0_29 = arith.constant 0 : index
    %c0_30 = arith.constant 0 : index
    %52 = vector.load %arg4[%c0_27, %c0_28, %c0_29, %c0_30] : memref<1x4x1x128xf32, #tpu.memory_space<vmem>>, vector<1x1x1x128xf32>
    %53 = vector.shape_cast %52 : vector<1x1x1x128xf32> to vector<1x128xf32>
    %c0_31 = arith.constant 0 : index
    %c1_32 = arith.constant 1 : index
    %c0_33 = arith.constant 0 : index
    %c0_34 = arith.constant 0 : index
    %54 = vector.load %arg4[%c0_31, %c1_32, %c0_33, %c0_34] : memref<1x4x1x128xf32, #tpu.memory_space<vmem>>, vector<1x1x1x128xf32>
    %55 = vector.shape_cast %54 : vector<1x1x1x128xf32> to vector<1x128xf32>
    %c0_35 = arith.constant 0 : index
    %c2_36 = arith.constant 2 : index
    %c0_37 = arith.constant 0 : index
    %c0_38 = arith.constant 0 : index
    %56 = vector.load %arg4[%c0_35, %c2_36, %c0_37, %c0_38] : memref<1x4x1x128xf32, #tpu.memory_space<vmem>>, vector<1x1x1x128xf32>
    %57 = vector.shape_cast %56 : vector<1x1x1x128xf32> to vector<1x128xf32>
    %c0_39 = arith.constant 0 : index
    %c3_40 = arith.constant 3 : index
    %c0_41 = arith.constant 0 : index
    %c0_42 = arith.constant 0 : index
    %58 = vector.load %arg4[%c0_39, %c3_40, %c0_41, %c0_42] : memref<1x4x1x128xf32, #tpu.memory_space<vmem>>, vector<1x1x1x128xf32>
    %59 = vector.shape_cast %58 : vector<1x1x1x128xf32> to vector<1x128xf32>
    %c0_43 = arith.constant 0 : index
    %c0_44 = arith.constant 0 : index
    %c0_45 = arith.constant 0 : index
    %60 = vector.load %arg5[%c0_43, %c0_44, %c0_45] : memref<1x1x128xf32, #tpu.memory_space<vmem>>, vector<1x1x128xf32>
    %61 = vector.shape_cast %60 : vector<1x1x128xf32> to vector<1x128xf32>
    %62 = vector.broadcast %53 : vector<1x128xf32> to vector<3x128xf32>
    %63 = arith.subf %45, %62 : vector<3x128xf32>
    %64 = math.absf %63 : vector<3x128xf32>
    %65 = vector.broadcast %55 : vector<1x128xf32> to vector<3x128xf32>
    %66 = arith.subf %47, %65 : vector<3x128xf32>
    %67 = math.absf %66 : vector<3x128xf32>
    %68 = arith.addf %64, %67 : vector<3x128xf32>
    %69 = vector.broadcast %57 : vector<1x128xf32> to vector<3x128xf32>
    %70 = arith.subf %49, %69 : vector<3x128xf32>
    %71 = math.absf %70 : vector<3x128xf32>
    %72 = arith.addf %68, %71 : vector<3x128xf32>
    %73 = vector.broadcast %59 : vector<1x128xf32> to vector<3x128xf32>
    %74 = arith.subf %51, %73 : vector<3x128xf32>
    %75 = math.absf %74 : vector<3x128xf32>
    %76 = arith.addf %72, %75 : vector<3x128xf32>
    %77 = vector.broadcast %61 : vector<1x128xf32> to vector<3x128xf32>
    %78 = arith.mulf %76, %77 : vector<3x128xf32>
    %cst_46 = arith.constant dense<0.000000e+00> : vector<3xf32>
    %79 = vector.multi_reduction <add>, %78, %cst_46 [1] : vector<3x128xf32> to vector<3xf32>
    %80 = vector.shape_cast %79 : vector<3xf32> to vector<3x1xf32>
    %cst_47 = arith.constant 5.000000e-01 : f32
    %81 = vector.broadcast %cst_47 : f32 to vector<3x128xf32>
    %82 = arith.mulf %81, %49 : vector<3x128xf32>
    %83 = arith.subf %45, %82 : vector<3x128xf32>
    %cst_48 = arith.constant 5.000000e-01 : f32
    %84 = vector.broadcast %cst_48 : f32 to vector<3x128xf32>
    %85 = arith.mulf %84, %49 : vector<3x128xf32>
    %86 = arith.addf %45, %85 : vector<3x128xf32>
    %cst_49 = arith.constant 5.000000e-01 : f32
    %87 = vector.broadcast %cst_49 : f32 to vector<3x128xf32>
    %88 = arith.mulf %87, %51 : vector<3x128xf32>
    %89 = arith.subf %47, %88 : vector<3x128xf32>
    %cst_50 = arith.constant 5.000000e-01 : f32
    %90 = vector.broadcast %cst_50 : f32 to vector<3x128xf32>
    %91 = arith.mulf %90, %51 : vector<3x128xf32>
    %92 = arith.addf %47, %91 : vector<3x128xf32>
    %cst_51 = arith.constant 5.000000e-01 : f32
    %93 = vector.broadcast %cst_51 : f32 to vector<1x128xf32>
    %94 = arith.mulf %93, %57 : vector<1x128xf32>
    %95 = arith.subf %53, %94 : vector<1x128xf32>
    %cst_52 = arith.constant 5.000000e-01 : f32
    %96 = vector.broadcast %cst_52 : f32 to vector<1x128xf32>
    %97 = arith.mulf %96, %57 : vector<1x128xf32>
    %98 = arith.addf %53, %97 : vector<1x128xf32>
    %cst_53 = arith.constant 5.000000e-01 : f32
    %99 = vector.broadcast %cst_53 : f32 to vector<1x128xf32>
    %100 = arith.mulf %99, %59 : vector<1x128xf32>
    %101 = arith.subf %55, %100 : vector<1x128xf32>
    %cst_54 = arith.constant 5.000000e-01 : f32
    %102 = vector.broadcast %cst_54 : f32 to vector<1x128xf32>
    %103 = arith.mulf %102, %59 : vector<1x128xf32>
    %104 = arith.addf %55, %103 : vector<1x128xf32>
    %105 = arith.subf %86, %83 : vector<3x128xf32>
    %106 = arith.subf %92, %89 : vector<3x128xf32>
    %107 = arith.mulf %105, %106 : vector<3x128xf32>
    %108 = arith.subf %98, %95 : vector<1x128xf32>
    %109 = arith.subf %104, %101 : vector<1x128xf32>
    %110 = arith.mulf %108, %109 : vector<1x128xf32>
    %111 = vector.broadcast %95 : vector<1x128xf32> to vector<3x128xf32>
    %112 = arith.maximumf %83, %111 : vector<3x128xf32>
    %113 = vector.broadcast %101 : vector<1x128xf32> to vector<3x128xf32>
    %114 = arith.maximumf %89, %113 : vector<3x128xf32>
    %115 = vector.broadcast %98 : vector<1x128xf32> to vector<3x128xf32>
    %116 = arith.minimumf %86, %115 : vector<3x128xf32>
    %117 = vector.broadcast %104 : vector<1x128xf32> to vector<3x128xf32>
    %118 = arith.minimumf %92, %117 : vector<3x128xf32>
    %119 = arith.subf %116, %112 : vector<3x128xf32>
    %cst_55 = arith.constant 0.000000e+00 : f32
    %120 = vector.broadcast %cst_55 : f32 to vector<3x128xf32>
    %121 = arith.maximumf %119, %120 : vector<3x128xf32>
    %122 = arith.subf %118, %114 : vector<3x128xf32>
    %cst_56 = arith.constant 0.000000e+00 : f32
    %123 = vector.broadcast %cst_56 : f32 to vector<3x128xf32>
    %124 = arith.maximumf %122, %123 : vector<3x128xf32>
    %125 = arith.mulf %121, %124 : vector<3x128xf32>
    %126 = vector.broadcast %110 : vector<1x128xf32> to vector<3x128xf32>
    %127 = arith.addf %107, %126 : vector<3x128xf32>
    %128 = arith.subf %127, %125 : vector<3x128xf32>
    %cst_57 = arith.constant 9.99999997E-7 : f32
    %129 = vector.broadcast %cst_57 : f32 to vector<3x128xf32>
    %130 = arith.maximumf %128, %129 : vector<3x128xf32>
    %131 = vector.broadcast %95 : vector<1x128xf32> to vector<3x128xf32>
    %132 = arith.minimumf %83, %131 : vector<3x128xf32>
    %133 = vector.broadcast %101 : vector<1x128xf32> to vector<3x128xf32>
    %134 = arith.minimumf %89, %133 : vector<3x128xf32>
    %135 = vector.broadcast %98 : vector<1x128xf32> to vector<3x128xf32>
    %136 = arith.maximumf %86, %135 : vector<3x128xf32>
    %137 = vector.broadcast %104 : vector<1x128xf32> to vector<3x128xf32>
    %138 = arith.maximumf %92, %137 : vector<3x128xf32>
    %139 = arith.subf %136, %132 : vector<3x128xf32>
    %140 = arith.subf %138, %134 : vector<3x128xf32>
    %141 = arith.mulf %139, %140 : vector<3x128xf32>
    %cst_58 = arith.constant 9.99999997E-7 : f32
    %142 = vector.broadcast %cst_58 : f32 to vector<3x128xf32>
    %143 = arith.maximumf %141, %142 : vector<3x128xf32>
    %144 = tpu.reciprocal %130 {approx = true} : vector<3x128xf32> -> vector<3x128xf32>
    %145 = arith.mulf %125, %144 : vector<3x128xf32>
    %146 = arith.subf %143, %130 : vector<3x128xf32>
    %147 = tpu.reciprocal %143 {approx = true} : vector<3x128xf32> -> vector<3x128xf32>
    %148 = arith.mulf %146, %147 : vector<3x128xf32>
    %149 = arith.subf %145, %148 : vector<3x128xf32>
    %cst_59 = arith.constant 1.000000e+00 : f32
    %150 = vector.broadcast %cst_59 : f32 to vector<3x128xf32>
    %151 = arith.subf %150, %149 : vector<3x128xf32>
    %152 = vector.broadcast %61 : vector<1x128xf32> to vector<3x128xf32>
    %153 = arith.mulf %151, %152 : vector<3x128xf32>
    %cst_60 = arith.constant dense<0.000000e+00> : vector<3xf32>
    %154 = vector.multi_reduction <add>, %153, %cst_60 [1] : vector<3x128xf32> to vector<3xf32>
    %155 = vector.shape_cast %154 : vector<3xf32> to vector<3x1xf32>
    %156 = tpu.iota {dimensions = array<i32: 1>} : vector<3x128xi32>
    %c0_i32 = arith.constant 0 : i32
    %157 = vector.broadcast %c0_i32 : i32 to vector<3x128xi32>
    %158 = arith.cmpi eq, %156, %157 : vector<3x128xi32>
    %cst_61 = arith.constant 0.000000e+00 : f32
    %159 = vector.shape_cast %43 : vector<3x1xf32> to vector<3x1xf32>
    %160 = vector.broadcast %159 : vector<3x1xf32> to vector<3x128xf32>
    %161 = vector.broadcast %cst_61 : f32 to vector<3x128xf32>
    %162 = arith.select %158, %160, %161 : vector<3x128xi1>, vector<3x128xf32>
    %c1_i32 = arith.constant 1 : i32
    %163 = vector.broadcast %c1_i32 : i32 to vector<3x128xi32>
    %164 = arith.cmpi eq, %156, %163 : vector<3x128xi32>
    %cst_62 = arith.constant 0.000000e+00 : f32
    %165 = vector.shape_cast %80 : vector<3x1xf32> to vector<3x1xf32>
    %166 = vector.broadcast %165 : vector<3x1xf32> to vector<3x128xf32>
    %167 = vector.broadcast %cst_62 : f32 to vector<3x128xf32>
    %168 = arith.select %164, %166, %167 : vector<3x128xi1>, vector<3x128xf32>
    %169 = arith.addf %162, %168 : vector<3x128xf32>
    %c2_i32 = arith.constant 2 : i32
    %170 = vector.broadcast %c2_i32 : i32 to vector<3x128xi32>
    %171 = arith.cmpi eq, %156, %170 : vector<3x128xi32>
    %cst_63 = arith.constant 0.000000e+00 : f32
    %172 = vector.shape_cast %155 : vector<3x1xf32> to vector<3x1xf32>
    %173 = vector.broadcast %172 : vector<3x1xf32> to vector<3x128xf32>
    %174 = vector.broadcast %cst_63 : f32 to vector<3x128xf32>
    %175 = arith.select %171, %173, %174 : vector<3x128xi1>, vector<3x128xf32>
    %176 = arith.addf %169, %175 : vector<3x128xf32>
    %c0_64 = arith.constant 0 : index
    %c0_65 = arith.constant 0 : index
    %c0_66 = arith.constant 0 : index
    %177 = vector.load %arg6[%c0_64, %c0_65, %c0_66] : memref<1x3x128xf32, #tpu.memory_space<vmem>>, vector<1x3x128xf32>
    %178 = vector.shape_cast %177 : vector<1x3x128xf32> to vector<3x128xf32>
    %179 = vector.shape_cast %176 : vector<3x128xf32> to vector<1x3x128xf32>
    tpu.vector_store %arg6[%c0_64, %c0_65, %c0_66], %179 {strides = array<i32>} : memref<1x3x128xf32, #tpu.memory_space<vmem>>, vector<1x3x128xf32>,
    return
  }
  func.func @transform_0(%arg0: i32) -> (i32, i32, i32) {
    %c0_i32 = arith.constant 0 : i32
    %c0_i32_0 = arith.constant 0 : i32
    %c0_i32_1 = arith.constant 0 : i32
    return %arg0, %c0_i32, %c0_i32_0 : i32, i32, i32
  }
  func.func @transform_1(%arg0: i32) -> (i32, i32, i32) {
    %c0_i32 = arith.constant 0 : i32
    %c0_i32_0 = arith.constant 0 : i32
    %c0_i32_1 = arith.constant 0 : i32
    return %arg0, %c0_i32, %c0_i32_0 : i32, i32, i32
  }
  func.func @transform_2(%arg0: i32) -> (i32, i32, i32, i32) {
    %c0_i32 = arith.constant 0 : i32
    %c0_i32_0 = arith.constant 0 : i32
    %c0_i32_1 = arith.constant 0 : i32
    %c0_i32_2 = arith.constant 0 : i32
    return %arg0, %c0_i32, %c0_i32_0, %c0_i32_1 : i32, i32, i32, i32
  }
  func.func @transform_3(%arg0: i32) -> (i32, i32, i32, i32) {
    %c0_i32 = arith.constant 0 : i32
    %c0_i32_0 = arith.constant 0 : i32
    %c0_i32_1 = arith.constant 0 : i32
    %c0_i32_2 = arith.constant 0 : i32
    return %arg0, %c0_i32, %c0_i32_0, %c0_i32_1 : i32, i32, i32, i32
  }
  func.func @transform_4(%arg0: i32) -> (i32, i32, i32) {
    %c0_i32 = arith.constant 0 : i32
    %c0_i32_0 = arith.constant 0 : i32
    %c0_i32_1 = arith.constant 0 : i32
    return %arg0, %c0_i32, %c0_i32_0 : i32, i32, i32
  }
  func.func @transform_5(%arg0: i32) -> (i32, i32, i32) {
    %c0_i32 = arith.constant 0 : i32
    %c0_i32_0 = arith.constant 0 : i32
    %c0_i32_1 = arith.constant 0 : i32
    return %arg0, %c0_i32, %c0_i32_0 : i32, i32, i32
  }
}

</mosaic_0001>

<llo_original>
// kernel: _track_loss_sums.1
$region0: #{_track_loss_sums.1}
  #allocation0 [shape = 'u32[]', space=smem, size = 0x4, offset = 0x4, fixed_abs, tag = 'smem constant byte address 0x4 - core index']
  #allocation1 [shape = 'u32[144,128]{1,0:T(1,128)}', space=vmem, size = 0x12000, scoped, tag = 'internal scratch']
  %s0 = inlined_call_operand.vmem [shape: f32[2,3,128], index: 0, kind: input, shape index: {}]
  %s1 = inlined_call_operand.vmem [shape: f32[2,1,128], index: 1, kind: input, shape index: {}]
  %s2 = inlined_call_operand.vmem [shape: f32[2,4,3,128], index: 2, kind: input, shape index: {}]
  %s3 = inlined_call_operand.vmem [shape: f32[2,4,1,128], index: 3, kind: input, shape index: {}]
  %s4 = inlined_call_operand.vmem [shape: f32[2,1,128], index: 4, kind: input, shape index: {}]
  %s5 = inlined_call_operand.vmem [shape: f32[2,3,128], index: 5, kind: output, shape index: {}]
  %s6 = sld [smem:[#allocation0]]
  $region53: #{_track_loss_sums.1} parent=0
    _
  %s8 = ssub.s32 1, %s6
  %s9 = scalar_select 0, %s8, %s6
  loop: start=0, step=1, limit=4
  $region2: #{_track_loss_sums.1} parent=0 // loop_pre_header
    _
  $region3: #{_track_loss_sums.1} parent=0 // loop_header
    %s11 = sphi 0, %s15
    %p12 = scmp.ge.s32.totalorder %s11, 4
    %s21 = sphi 0, %s23
    %s24 = sphi 0, %s21
    %s25 = sphi 0, %s24
    %s41 = sphi 0, %s25
    %s47 = sphi 0, %s49
    %s50 = sphi 0, %s47
    %s51 = sphi 0, %s50
    %s67 = sphi 0, %s51
    %s73 = sphi 0, %s75
    %s76 = sphi 0, %s73
    %s77 = sphi 0, %s76
    %s93 = sphi 0, %s77
    %s99 = sphi 0, %s101
    %s102 = sphi 0, %s99
    %s103 = sphi 0, %s102
    %s119 = sphi 0, %s103
    %s125 = sphi 0, %s127
    %s128 = sphi 0, %s125
    %s129 = sphi 0, %s128
    %s145 = sphi 0, %s129
    %s151 = sphi 0, %s153
    %s154 = sphi 0, %s151
    %s155 = sphi 0, %s154
    %s171 = sphi 0, %s155
  $region4: #{_track_loss_sums.1} parent=0 // loop_header_branch
    %14 = sbr.rel (%p12) target = $region8
  $region5: #{_track_loss_sums.1} parent=0 // loop_body
    %s16 = ssub.s32 %s11, 1
    %s17 = ssub.s32 %s11, 2
    %s18 = sadd.s32 %s11, 1
    %s19 = ssub.s32 %s11, %s18
    %p20 = scmp.eq.s32.totalorder %s19, 0
    %s22 = sadd.s32 %s21, 1
    %s23 = scalar_select %p20, %s21, %s22
    %p26 = pneg %p20
    %p27 = scmp.eq.s32.totalorder %s11, 1
    %p28 = por %p26, %p27
    %p29 = scmp.ne.s32.totalorder %s21, %s24
    %p30 = scmp.eq.s32.totalorder %s11, 0
    %p31 = por %p29, %p30
    %p32 = scmp.ne.s32.totalorder %s21, %s24
    %p33 = scmp.eq.s32.totalorder %s16, 1
    %p34 = por %p32, %p33
    %p35 = scmp.ne.s32.totalorder %s24, %s25
    %p36 = scmp.eq.s32.totalorder %s16, 0
    %p37 = por %p35, %p36
    %p38 = scmp.ne.s32.totalorder %s24, %s25
    %p39 = scmp.eq.s32.totalorder %s17, 1
    %p40 = por %p38, %p39
    %p42 = scmp.ne.s32.totalorder %s25, %s41
    %p43 = scmp.eq.s32.totalorder %s17, 0
    %p44 = por %p42, %p43
    %s45 = ssub.s32 %s11, %s18
    %p46 = scmp.eq.s32.totalorder %s45, 0
    %s48 = sadd.s32 %s47, 1
    %s49 = scalar_select %p46, %s47, %s48
    %p52 = pneg %p46
    %p53 = scmp.eq.s32.totalorder %s11, 1
    %p54 = por %p52, %p53
    %p55 = scmp.ne.s32.totalorder %s47, %s50
    %p56 = scmp.eq.s32.totalorder %s11, 0
    %p57 = por %p55, %p56
    %p58 = scmp.ne.s32.totalorder %s47, %s50
    %p59 = scmp.eq.s32.totalorder %s16, 1
    %p60 = por %p58, %p59
    %p61 = scmp.ne.s32.totalorder %s50, %s51
    %p62 = scmp.eq.s32.totalorder %s16, 0
    %p63 = por %p61, %p62
    %p64 = scmp.ne.s32.totalorder %s50, %s51
    %p65 = scmp.eq.s32.totalorder %s17, 1
    %p66 = por %p64, %p65
    %p68 = scmp.ne.s32.totalorder %s51, %s67
    %p69 = scmp.eq.s32.totalorder %s17, 0
    %p70 = por %p68, %p69
    %s71 = ssub.s32 %s11, %s18
    %p72 = scmp.eq.s32.totalorder %s71, 0
    %s74 = sadd.s32 %s73, 1
    %s75 = scalar_select %p72, %s73, %s74
    %p78 = pneg %p72
    %p79 = scmp.eq.s32.totalorder %s11, 1
    %p80 = por %p78, %p79
    %p81 = scmp.ne.s32.totalorder %s73, %s76
    %p82 = scmp.eq.s32.totalorder %s11, 0
    %p83 = por %p81, %p82
    %p84 = scmp.ne.s32.totalorder %s73, %s76
    %p85 = scmp.eq.s32.totalorder %s16, 1
    %p86 = por %p84, %p85
    %p87 = scmp.ne.s32.totalorder %s76, %s77
    %p88 = scmp.eq.s32.totalorder %s16, 0
    %p89 = por %p87, %p88
    %p90 = scmp.ne.s32.totalorder %s76, %s77
    %p91 = scmp.eq.s32.totalorder %s17, 1
    %p92 = por %p90, %p91
    %p94 = scmp.ne.s32.totalorder %s77, %s93
    %p95 = scmp.eq.s32.totalorder %s17, 0
    %p96 = por %p94, %p95
    %s97 = ssub.s32 %s11, %s18
    %p98 = scmp.eq.s32.totalorder %s97, 0
    %s100 = sadd.s32 %s99, 1
    %s101 = scalar_select %p98, %s99, %s100
    %p104 = pneg %p98
    %p105 = scmp.eq.s32.totalorder %s11, 1
    %p106 = por %p104, %p105
    %p107 = scmp.ne.s32.totalorder %s99, %s102
    %p108 = scmp.eq.s32.totalorder %s11, 0
    %p109 = por %p107, %p108
    %p110 = scmp.ne.s32.totalorder %s99, %s102
    %p111 = scmp.eq.s32.totalorder %s16, 1
    %p112 = por %p110, %p111
    %p113 = scmp.ne.s32.totalorder %s102, %s103
    %p114 = scmp.eq.s32.totalorder %s16, 0
    %p115 = por %p113, %p114
    %p116 = scmp.ne.s32.totalorder %s102, %s103
    %p117 = scmp.eq.s32.totalorder %s17, 1
    %p118 = por %p116, %p117
    %p120 = scmp.ne.s32.totalorder %s103, %s119
    %p121 = scmp.eq.s32.totalorder %s17, 0
    %p122 = por %p120, %p121
    %s123 = ssub.s32 %s11, %s18
    %p124 = scmp.eq.s32.totalorder %s123, 0
    %s126 = sadd.s32 %s125, 1
    %s127 = scalar_select %p124, %s125, %s126
    %p130 = pneg %p124
    %p131 = scmp.eq.s32.totalorder %s11, 1
    %p132 = por %p130, %p131
    %p133 = scmp.ne.s32.totalorder %s125, %s128
    %p134 = scmp.eq.s32.totalorder %s11, 0
    %p135 = por %p133, %p134
    %p136 = scmp.ne.s32.totalorder %s125, %s128
    %p137 = scmp.eq.s32.totalorder %s16, 1
    %p138 = por %p136, %p137
    %p139 = scmp.ne.s32.totalorder %s128, %s129
    %p140 = scmp.eq.s32.totalorder %s16, 0
    %p141 = por %p139, %p140
    %p142 = scmp.ne.s32.totalorder %s128, %s129
    %p143 = scmp.eq.s32.totalorder %s17, 1
    %p144 = por %p142, %p143
    %p146 = scmp.ne.s32.totalorder %s129, %s145
    %p147 = scmp.eq.s32.totalorder %s17, 0
    %p148 = por %p146, %p147
    %s149 = ssub.s32 %s11, %s18
    %p150 = scmp.eq.s32.totalorder %s149, 0
    %s152 = sadd.s32 %s151, 1
    %s153 = scalar_select %p150, %s151, %s152
    %p156 = pneg %p150
    %p157 = scmp.eq.s32.totalorder %s11, 1
    %p158 = por %p156, %p157
    %p159 = scmp.ne.s32.totalorder %s151, %s154
    %p160 = scmp.eq.s32.totalorder %s11, 0
    %p161 = por %p159, %p160
    %p162 = scmp.ne.s32.totalorder %s151, %s154
    %p163 = scmp.eq.s32.totalorder %s16, 1
    %p164 = por %p162, %p163
    %p165 = scmp.ne.s32.totalorder %s154, %s155
    %p166 = scmp.eq.s32.totalorder %s16, 0
    %p167 = por %p165, %p166
    %p168 = scmp.ne.s32.totalorder %s154, %s155
    %p169 = scmp.eq.s32.totalorder %s17, 1
    %p170 = por %p168, %p169
    %p172 = scmp.ne.s32.totalorder %s155, %s171
    %p173 = scmp.eq.s32.totalorder %s17, 0
    %p174 = por %p172, %p173
    %p175 = scmp.le.s32.totalorder 1, %s11
    %p176 = scmp.lt.s32.totalorder %s11, 3
    %p177 = pnand %p175, %p176
    %p178 = pneg %p177
    // Predicated region
    $region9: #{_track_loss_sums.1} parent=5 // pred_check
      _
    $region10: #{_track_loss_sums.1} parent=5 // pred_check_branch
      %180 = sbr.rel (%p177) target = $region12
    $region11: #{_track_loss_sums.1} parent=5 // pred_region
      %s181 = ssub.s32 %s11, 1
    $region12: #{_track_loss_sums.1} parent=5 // pred_fallthru
      _
    %p182 = scmp.lt.s32.totalorder %s11, 2
    // Predicated region
    $region13: #{_track_loss_sums.1} parent=5 // pred_check
      %p183 = pneg %p182
    $region14: #{_track_loss_sums.1} parent=5 // pred_check_branch
      %185 = sbr.rel (%p183) target = $region16
    $region15: #{_track_loss_sums.1} parent=5 // pred_region
      // Predicated region
      $region17: #{_track_loss_sums.1} parent=15 // pred_check
        %p186 = pneg %p31
      $region18: #{_track_loss_sums.1} parent=15 // pred_check_branch
        %188 = sbr.rel (%p186) target = $region20
      $region19: #{_track_loss_sums.1} parent=15 // pred_region
        %p189 = scmp.lt.s32.totalorder %s11, 1
        %s190 = scalar_select %p189, %s11, 1
        %s191 = smul.addr %s190, 4
        %s192 = scalar_lea.vmem %s0, %s191
      $region20: #{_track_loss_sums.1} parent=15 // pred_fallthru
        _
      // Predicated region
      $region21: #{_track_loss_sums.1} parent=15 // pred_check
        %p193 = pneg %p57
      $region22: #{_track_loss_sums.1} parent=15 // pred_check_branch
        %195 = sbr.rel (%p193) target = $region24
      $region23: #{_track_loss_sums.1} parent=15 // pred_region
        %p196 = scmp.lt.s32.totalorder %s11, 1
        %s197 = scalar_select %p196, %s11, 1
        %s198 = scalar_lea.vmem %s1, %s197
      $region24: #{_track_loss_sums.1} parent=15 // pred_fallthru
        _
      // Predicated region
      $region25: #{_track_loss_sums.1} parent=15 // pred_check
        %p199 = pneg %p83
      $region26: #{_track_loss_sums.1} parent=15 // pred_check_branch
        %201 = sbr.rel (%p199) target = $region28
      $region27: #{_track_loss_sums.1} parent=15 // pred_region
        %p202 = scmp.lt.s32.totalorder %s11, 1
        %s203 = scalar_select %p202, %s11, 1
        %s204 = smul.addr %s203, 4
        %s205 = smul.addr %s204, 4
        %s206 = scalar_lea.vmem %s2, %s205
      $region28: #{_track_loss_sums.1} parent=15 // pred_fallthru
        _
      // Predicated region
      $region29: #{_track_loss_sums.1} parent=15 // pred_check
        %p207 = pneg %p109
      $region30: #{_track_loss_sums.1} parent=15 // pred_check_branch
        %209 = sbr.rel (%p207) target = $region32
      $region31: #{_track_loss_sums.1} parent=15 // pred_region
        %p210 = scmp.lt.s32.totalorder %s11, 1
        %s211 = scalar_select %p210, %s11, 1
        %s212 = smul.addr %s211, 4
        %s213 = scalar_lea.vmem %s3, %s212
      $region32: #{_track_loss_sums.1} parent=15 // pred_fallthru
        _
      // Predicated region
      $region33: #{_track_loss_sums.1} parent=15 // pred_check
        %p214 = pneg %p135
      $region34: #{_track_loss_sums.1} parent=15 // pred_check_branch
        %216 = sbr.rel (%p214) target = $region36
      $region35: #{_track_loss_sums.1} parent=15 // pred_region
        %p217 = scmp.lt.s32.totalorder %s11, 1
        %s218 = scalar_select %p217, %s11, 1
        %s219 = scalar_lea.vmem %s4, %s218
      $region36: #{_track_loss_sums.1} parent=15 // pred_fallthru
        _
    $region16: #{_track_loss_sums.1} parent=5 // pred_fallthru
      _
    %p220 = scmp.le.s32.totalorder 1, %s11
    %p221 = scmp.lt.s32.totalorder %s11, 3
    %p222 = pnand %p220, %p221
    %p223 = pneg %p222
    // Predicated region
    $region37: #{_track_loss_sums.1} parent=5 // pred_check
      _
    $region38: #{_track_loss_sums.1} parent=5 // pred_check_branch
      %225 = sbr.rel (%p222) target = $region40
    $region39: #{_track_loss_sums.1} parent=5 // pred_region
      %s226 = ssub.s32 %s11, 1
      %p227 = scmp.lt.s32.totalorder %s16, 1
      %s228 = scalar_select %p227, %s16, 1
      %s229 = smul.addr %s228, 4
      %s230 = scalar_lea.vmem %s0, %s229
      %p231 = pneg %p37
      %p232 = pneg %p34
      %p233 = scmp.lt.s32.totalorder %s16, 1
      %s234 = scalar_select %p233, %s16, 1
      %s235 = scalar_lea.vmem %s1, %s234
      %p236 = pneg %p63
      %p237 = pneg %p60
      %p238 = scmp.lt.s32.totalorder %s16, 1
      %s239 = scalar_select %p238, %s16, 1
      %s240 = smul.addr %s239, 4
      %s241 = smul.addr %s240, 4
      %s242 = scalar_lea.vmem %s2, %s241
      %p243 = pneg %p89
      %p244 = pneg %p86
      %p245 = scmp.lt.s32.totalorder %s16, 1
      %s246 = scalar_select %p245, %s16, 1
      %s247 = smul.addr %s246, 4
      %s248 = scalar_lea.vmem %s3, %s247
      %p249 = pneg %p115
      %p250 = pneg %p112
      %p251 = scmp.lt.s32.totalorder %s16, 1
      %s252 = scalar_select %p251, %s16, 1
      %s253 = scalar_lea.vmem %s4, %s252
      %p254 = pneg %p141
      %p255 = pneg %p138
      %p256 = pneg %p167
      %p257 = pneg %p164
      %p258 = scmp.lt.s32.totalorder %s16, 1
      %s259 = scalar_select %p258, %s16, 1
      %s260 = smul.addr %s259, 4
      %s261 = scalar_lea.vmem %s5, %s260
      %p262 = scmp.lt.s32.totalorder %s16, 1
      %s263 = scalar_select %p262, %s16, 1
      %s264 = smul.addr %s263, 4
      %s265 = scalar_lea.vmem %s0, %s264
      %p266 = scmp.lt.s32.totalorder %s16, 1
      %s267 = scalar_select %p266, %s16, 1
      %s268 = scalar_lea.vmem %s1, %s267
      %p269 = scmp.lt.s32.totalorder %s16, 1
      %s270 = scalar_select %p269, %s16, 1
      %s271 = smul.addr %s270, 4
      %s272 = smul.addr %s271, 4
      %s273 = scalar_lea.vmem %s2, %s272
      %p274 = scmp.lt.s32.totalorder %s16, 1
      %s275 = scalar_select %p274, %s16, 1
      %s276 = smul.addr %s275, 4
      %s277 = scalar_lea.vmem %s3, %s276
      %p278 = scmp.lt.s32.totalorder %s16, 1
      %s279 = scalar_select %p278, %s16, 1
      %s280 = scalar_lea.vmem %s4, %s279
      %p281 = scmp.lt.s32.totalorder %s16, 1
      %s282 = scalar_select %p281, %s16, 1
      %s283 = smul.addr %s282, 4
      %s284 = scalar_lea.vmem %s5, %s283
      %v285 = vld [vmem:[%s265] sm:$0x7]
      %v286 = vld [vmem:[%s268] sm:$0x1]
      %v287 = vand.u32 2147483647, %v285
      %v288 = vsub.f32 0.0, %v287
      %v289 = vmul.f32 %v288, 1.442695
      %v290 = vpow.pop %v289
      %v291 = vadd.f32 %v290, 1.0
      %v292 = vrcp.pop %v291
      %vm293 = vcmp.ge.f32.partialorder %v285, 0.0
      %v294 = vmul.f32 %v290, %v292
      %v295 = vsel %vm293, %v292, %v294
      %v296 = vsub.f32 1.0, %v295
      %v298 = vlaneseq
      %v299 = vshrl.u32 %v298, 7
      %v300 = vsub.s32 0, %v299
      %v301 = vrot.slane %v286, %v300
      %v303 = vmul.f32 %v296, %v301
      %v304 = vsub.f32 1.0, %v286
      %v306 = vlaneseq
      %v307 = vshrl.u32 %v306, 7
      %v308 = vsub.s32 0, %v307
      %v309 = vrot.slane %v304, %v308
      %v311 = vmul.f32 %v295, %v309
      %v312 = vadd.f32 %v303, %v311
      %v313 = vmul.f32 %v286, 0.25
      %v314 = vmul.f32 %v304, 0.75
      %v315 = vadd.f32 %v313, %v314
      %v316 = vmul.f32 %v312, %v312
      %v318 = vlaneseq
      %v319 = vshrl.u32 %v318, 7
      %v320 = vsub.s32 0, %v319
      %v321 = vrot.slane %v315, %v320
      %v323 = vmul.f32 %v321, %v316
      %v324 = vmax.f32 %v285, 0.0
      %v325 = vmul.f32 %v285, %v301
      %v326 = vsub.f32 %v324, %v325
      %v327 = vadd.f32 %v290, 1.0
      %v328 = vlog2.pop %v327
      %v329 = vmul.f32 %v328, 0.6931472
      %v330 = vmul.f32 -0.5, %v290
      %v331 = vadd.f32 %v330, 1.0
      %v332 = vmul.f32 %v331, %v290
      %v333 = vand.u32 2147483647, %v290
      %vm334 = vcmp.lt.f32.partialorder %v333, 0.0004427343
      %v335 = vsel %vm334, %v332, %v329
      %v336 = vadd.f32 %v326, %v335
      %v337 = vmul.f32 %v336, %v323
      %vm338 = vcmask 1042432
      %v339 = vsel %vm338, %v337, 0.0
      %340 = vadd.xlane.f32.xlu0 %v339
      %v341 = vpop.xlane.xlu0 %340
      %v342 = vld [vmem:[%s273] sm:$0x7]
      %s343 = scalar_lea.vmem %s273, 4
      %v344 = vld [vmem:[%s343] sm:$0x7]
      %s345 = scalar_lea.vmem %s273, 8
      %v346 = vld [vmem:[%s345] sm:$0x7]
      %s347 = scalar_lea.vmem %s273, 12
      %v348 = vld [vmem:[%s347] sm:$0x7]
      %v349 = vld [vmem:[%s277] sm:$0x1]
      %s350 = scalar_lea.vmem %s277, 1
      %v351 = vld [vmem:[%s350] sm:$0x1]
      %s352 = scalar_lea.vmem %s277, 2
      %v353 = vld [vmem:[%s352] sm:$0x1]
      %s354 = scalar_lea.vmem %s277, 3
      %v355 = vld [vmem:[%s354] sm:$0x1]
      %v356 = vld [vmem:[%s280] sm:$0x1]
      %v358 = vlaneseq
      %v359 = vshrl.u32 %v358, 7
      %v360 = vsub.s32 0, %v359
      %v361 = vrot.slane %v349, %v360
      %v363 = vsub.f32 %v342, %v361
      %v364 = vand.u32 2147483647, %v363
      %v366 = vlaneseq
      %v367 = vshrl.u32 %v366, 7
      %v368 = vsub.s32 0, %v367
      %v369 = vrot.slane %v351, %v368
      %v371 = vsub.f32 %v344, %v369
      %v372 = vand.u32 2147483647, %v371
      %v373 = vadd.f32 %v364, %v372
      %v375 = vlaneseq
      %v376 = vshrl.u32 %v375, 7
      %v377 = vsub.s32 0, %v376
      %v378 = vrot.slane %v353, %v377
      %v380 = vsub.f32 %v346, %v378
      %v381 = vand.u32 2147483647, %v380
      %v382 = vadd.f32 %v373, %v381
      %v384 = vlaneseq
      %v385 = vshrl.u32 %v384, 7
      %v386 = vsub.s32 0, %v385
      %v387 = vrot.slane %v355, %v386
      %v389 = vsub.f32 %v348, %v387
      %v390 = vand.u32 2147483647, %v389
      %v391 = vadd.f32 %v382, %v390
      %v393 = vlaneseq
      %v394 = vshrl.u32 %v393, 7
      %v395 = vsub.s32 0, %v394
      %v396 = vrot.slane %v356, %v395
      %v398 = vmul.f32 %v391, %v396
      %v399 = vsel %vm338, %v398, 0.0
      %400 = vadd.xlane.f32.xlu0 %v399
      %v401 = vpop.xlane.xlu0 %400
      %v402 = vmul.f32 %v346, 0.5
      %v403 = vsub.f32 %v342, %v402
      %v404 = vadd.f32 %v342, %v402
      %v405 = vmul.f32 %v348, 0.5
      %v406 = vsub.f32 %v344, %v405
      %v407 = vadd.f32 %v344, %v405
      %v408 = vmul.f32 %v353, 0.5
      %v409 = vsub.f32 %v349, %v408
      %v410 = vadd.f32 %v349, %v408
      %v411 = vmul.f32 %v355, 0.5
      %v412 = vsub.f32 %v351, %v411
      %v413 = vadd.f32 %v351, %v411
      %v414 = vsub.f32 %v404, %v403
      %v415 = vsub.f32 %v407, %v406
      %v416 = vmul.f32 %v414, %v415
      %v417 = vsub.f32 %v410, %v409
      %v418 = vsub.f32 %v413, %v412
      %v419 = vmul.f32 %v417, %v418
      %v421 = vlaneseq
      %v422 = vshrl.u32 %v421, 7
      %v423 = vsub.s32 0, %v422
      %v424 = vrot.slane %v409, %v423
      %v426 = vmax.f32 %v403, %v424
      %v428 = vlaneseq
      %v429 = vshrl.u32 %v428, 7
      %v430 = vsub.s32 0, %v429
      %v431 = vrot.slane %v412, %v430
      %v433 = vmax.f32 %v406, %v431
      %v435 = vlaneseq
      %v436 = vshrl.u32 %v435, 7
      %v437 = vsub.s32 0, %v436
      %v438 = vrot.slane %v410, %v437
      %v440 = vmin.f32 %v404, %v438
      %v442 = vlaneseq
      %v443 = vshrl.u32 %v442, 7
      %v444 = vsub.s32 0, %v443
      %v445 = vrot.slane %v413, %v444
      %v447 = vmin.f32 %v407, %v445
      %v448 = vsub.f32 %v440, %v426
      %v449 = vmax.f32 %v448, 0.0
      %v450 = vsub.f32 %v447, %v433
      %v451 = vmax.f32 %v450, 0.0
      %v452 = vmul.f32 %v449, %v451
      %v454 = vlaneseq
      %v455 = vshrl.u32 %v454, 7
      %v456 = vsub.s32 0, %v455
      %v457 = vrot.slane %v419, %v456
      %v459 = vadd.f32 %v416, %v457
      %v460 = vsub.f32 %v459, %v452
      %v461 = vmax.f32 %v460, 1e-06
      %v462 = vmin.f32 %v403, %v424
      %v463 = vmin.f32 %v406, %v431
      %v464 = vmax.f32 %v404, %v438
      %v465 = vmax.f32 %v407, %v445
      %v466 = vsub.f32 %v464, %v462
      %v467 = vsub.f32 %v465, %v463
      %v468 = vmul.f32 %v466, %v467
      %v469 = vmax.f32 %v468, 1e-06
      %v470 = vrcp.pop %v461
      %v471 = vmul.f32 %v452, %v470
      %v472 = vsub.f32 %v469, %v461
      %v473 = vrcp.pop %v469
      %v474 = vmul.f32 %v472, %v473
      %v475 = vsub.f32 %v471, %v474
      %v476 = vsub.f32 1.0, %v475
      %v477 = vmul.f32 %v476, %v396
      %v478 = vsel %vm338, %v477, 0.0
      %479 = vadd.xlane.f32.xlu0 %v478
      %v480 = vpop.xlane.xlu0 %479
      %v481 = vlaneseq
      %v482 = vand.u32 %v481, 127
      %vm483 = vcmp.eq.s32.totalorder %v482, 0
      %v484 = vsel %vm483, %v341, 0.0
      %vm485 = vcmp.eq.s32.totalorder %v482, 1
      %v486 = vsel %vm485, %v401, 0.0
      %v487 = vadd.f32 %v484, %v486
      %vm488 = vcmp.eq.s32.totalorder %v482, 2
      %v489 = vsel %vm488, %v480, 0.0
      %v490 = vadd.f32 %v487, %v489
      %491 = vst [vmem:[%s284] sm:$0x7] %v490
      %p492 = scmp.lt.s32.totalorder %s16, 1
      %s493 = scalar_select %p492, %s16, 1
      %s494 = smul.addr %s493, 4
      %s495 = scalar_lea.vmem %s5, %s494
      // Predicated region
      $region41: #{_track_loss_sums.1} parent=39 // pred_check
        %p496 = pneg %p164
      $region42: #{_track_loss_sums.1} parent=39 // pred_check_branch
        %498 = sbr.rel (%p496) target = $region44
      $region43: #{_track_loss_sums.1} parent=39 // pred_region
        _
      $region44: #{_track_loss_sums.1} parent=39 // pred_fallthru
        _
    $region40: #{_track_loss_sums.1} parent=5 // pred_fallthru
      _
    %p499 = scmp.le.s32.totalorder 2, %s11
    // Predicated region
    $region45: #{_track_loss_sums.1} parent=5 // pred_check
      %p500 = pneg %p499
    $region46: #{_track_loss_sums.1} parent=5 // pred_check_branch
      %502 = sbr.rel (%p500) target = $region48
    $region47: #{_track_loss_sums.1} parent=5 // pred_region
      %s503 = ssub.s32 %s11, 2
      // Predicated region
      $region49: #{_track_loss_sums.1} parent=47 // pred_check
        %p504 = pneg %p170
      $region50: #{_track_loss_sums.1} parent=47 // pred_check_branch
        %506 = sbr.rel (%p504) target = $region52
      $region51: #{_track_loss_sums.1} parent=47 // pred_region
        %p507 = scmp.lt.s32.totalorder %s17, 1
        %s508 = scalar_select %p507, %s17, 1
        %s509 = smul.addr %s508, 4
        %s510 = scalar_lea.vmem %s5, %s509
      $region52: #{_track_loss_sums.1} parent=47 // pred_fallthru
        _
    $region48: #{_track_loss_sums.1} parent=5 // pred_fallthru
      _
  $region6: #{_track_loss_sums.1} parent=0 // loop_footer
    %s15 = sadd.s32 1, %s11
  $region7: #{_track_loss_sums.1} parent=0 // loop_footer_branch
    %10 = sbr.rel target = $region3
  $region8: #{_track_loss_sums.1} parent=0 // loop_exit
    _

</llo_original>
